<compile_context>
chip_gen: v7x
topology: tpu7x:2x2x1
jax: 0.10.0
libtpu: 0.0.40
codegen_flags: <defaults>
</compile_context>

<pallas_src>
import functools

import jax
import jax.numpy as jnp
from jax.experimental import pallas as pl
from jax.experimental.pallas import tpu as pltpu


# ----------------------------- Pallas kernel ------------------------------- #

def _gnn_stack_kernel(x_hbm, a_in, w_ref, b_ref, o_ref, *scratch,
                      tm, l2norm, a_resident):
    """Fused GNN stack.  Grid: (layer, row_tile).

      x_hbm : (Np, Dp) fp32 HBM  input features (pl.ANY; DMA'd once into o_ref)
      a_in  : resident: (Np, Np) bf16 HBM (pl.ANY)  |  streaming: (tm, Np) bf16 VMEM
      w_ref : (1, Dp, Dp) bf16  weight of current layer
      b_ref : (1, 1, Dp)  fp32  bias of current layer
      o_ref : (Np, Dp) fp32  resident activations / final output (constant index map)
      scratch (resident):  a_vmem (Np,Np) bf16, h (Np,Dp) bf16, sems DMA(2)
      scratch (streaming): h (Np,Dp) bf16, sems DMA(2)
    """
    if a_resident:
        a_vmem, h_ref, sems = scratch
    else:
        h_ref, sems = scratch
        a_vmem = None

    l = pl.program_id(0)
    i = pl.program_id(1)
    nl = pl.num_programs(0)

    # ---- One-shot seeding at the very first grid step: X -> resident activations,
    #      and (if it fits) A_hat -> VMEM so it is never re-streamed per layer.
    @pl.when(jnp.logical_and(l == 0, i == 0))
    def _():
        x_cp = pltpu.make_async_copy(x_hbm, o_ref, sems.at[0])
        x_cp.start()
        if a_resident:
            a_cp = pltpu.make_async_copy(a_in, a_vmem, sems.at[1])
            a_cp.start()
            a_cp.wait()
        x_cp.wait()

    # ---- Per-layer preamble: H = X_cur @ W_l (bf16 MXU inputs, fp32 accumulation),
    #      cached once and reused by every row tile of this layer.
    @pl.when(i == 0)
    def _():
        h_ref[...] = jnp.dot(
            o_ref[...].astype(jnp.bfloat16), w_ref[0],
            preferred_element_type=jnp.float32,
        ).astype(jnp.bfloat16)

    roff = pl.multiple_of(i * tm, tm)
    if a_resident:
        a_tile = a_vmem[pl.ds(roff, tm), :]
    else:
        a_tile = a_in[...]

    # ---- Full-K row-tile contraction: (tm, Np) @ (Np, Dp), fp32 accumulator on MXU.
    y = jnp.dot(a_tile, h_ref[...], preferred_element_type=jnp.float32)
    y = jnp.maximum(y + b_ref[0], 0.0)                    # bias + ReLU

    def _store(val):
        o_ref[pl.ds(roff, tm), :] = val.astype(o_ref.dtype)

    if l2norm:
        @pl.when(l == nl - 1)
        def _():
            # F.normalize(p=2, dim=-1): x / max(||x||, 1e-12), via one rsqrt (EUP).
            ss = jnp.sum(y * y, axis=-1, keepdims=True)
            _store(y * jax.lax.rsqrt(jnp.maximum(ss, 1e-24)))

        @pl.when(l < nl - 1)
        def _():
            _store(y)
    else:
        _store(y)


# ------------------------------ Host wrapper ------------------------------- #

def _round_up(x, m):
    return ((x + m - 1) // m) * m


def gnn_stack_stage(node_feature, a_hat, weights, biases, *, l2norm=True,
                    tile_n=1024, force_a_resident=None, vmem_limit_bytes=None):
    """Forward pass of GNNStackStage over dense node features.

    node_feature: [N, D], a_hat: [N, N] (normalized adjacency),
    weights: list of [D, D], biases: list of [1, D] (or [D]).
    """
    n, d = node_feature.shape
    num_layers = len(weights)
    assert num_layers >= 1 and len(biases) == num_layers
    for w in weights:
        assert tuple(w.shape) == (d, d), "GNNStackStage requires dim_in == dim_out"

    # Lane-dense feature dim (multiple of 128) and tile-aligned node dim.
    d_pad = _round_up(d, 128)
    tile_n = max(128, (tile_n // 128) * 128)
    n_pad = _round_up(n, 128)
    tile_n = min(tile_n, n_pad)
    n_pad = _round_up(n_pad, tile_n)

    # Zero-pad (exact for real rows: padded A rows/cols and W/b rows/cols are zero).
    x_p = jnp.pad(node_feature.astype(jnp.float32),
                  ((0, n_pad - n), (0, d_pad - d)))
    a_p = jnp.pad(a_hat, ((0, n_pad - n), (0, n_pad - n))).astype(jnp.bfloat16)
    w_stack = jnp.stack([
        jnp.pad(jnp.asarray(w, jnp.float32),
                ((0, d_pad - w.shape[0]), (0, d_pad - w.shape[1])))
        for w in weights
    ]).astype(jnp.bfloat16)                                     # [L, Dp, Dp] bf16
    b_stack = jnp.stack([
        jnp.pad(jnp.asarray(b, jnp.float32).reshape(1, -1), ((0, 0), (0, d_pad - d)))
        for b in biases
    ])                                                          # [L, 1, Dp]  fp32

    # ---- VMEM capacity / footprint bookkeeping (always set the limit explicitly).
    vmem_cap = 64 * 1024 * 1024                 # conservative default (v7x physical)
    try:
        info = pltpu.get_tpu_info()
        vmem_cap = int(getattr(info, "vmem_capacity_bytes", vmem_cap))
    except Exception:
        pass

    bytes_act = n_pad * d_pad
    # resident o (fp32) + h (bf16) + preamble/cast temps + y temps + W/b double-buffers
    base = (bytes_act * 12
            + 2 * d_pad * d_pad * 2
            + 2 * d_pad * 4
            + 2 * tile_n * d_pad * 4)
    bytes_a_res = n_pad * n_pad * 2

    a_resident = (base + bytes_a_res) <= int(0.85 * vmem_cap)
    if force_a_resident is not None:
        a_resident = bool(force_a_resident)

    if a_resident:
        footprint = base + bytes_a_res
        a_spec = pl.BlockSpec(memory_space=pl.ANY)              # raw HBM, one-shot DMA
        scratch_shapes = [
            pltpu.VMEM((n_pad, n_pad), jnp.bfloat16),           # resident A_hat
            pltpu.VMEM((n_pad, d_pad), jnp.bfloat16),           # H = X @ W (per layer)
            pltpu.SemaphoreType.DMA((2,)),
        ]
    else:
        # TODO(synk): for graphs where even 3 * tile_n * n_pad bf16 A blocks (or the
        # resident activations) overflow VMEM, add a K-tiled streaming variant.
        footprint = base + 3 * tile_n * n_pad * 2
        a_spec = pl.BlockSpec((tile_n, n_pad), lambda l, i: (i, 0),
                              pipeline_mode=pl.Buffered(3))     # hide preamble bubble
        scratch_shapes = [
            pltpu.VMEM((n_pad, d_pad), jnp.bfloat16),           # H = X @ W (per layer)
            pltpu.SemaphoreType.DMA((2,)),
        ]

    if vmem_limit_bytes is None:
        vmem_limit_bytes = min(
            vmem_cap, max(32 * 1024 * 1024, int(1.5 * footprint) + (4 << 20)))

    grid = (num_layers, n_pad // tile_n)

    flops = int(num_layers * (2 * n_pad * d_pad * d_pad + 2 * n_pad * n_pad * d_pad))
    bytes_accessed = int(
        (1 if a_resident else num_layers) * n_pad * n_pad * 2   # A_hat (bf16)
        + 2 * n_pad * d_pad * 4                                 # X in + final X out
        + num_layers * (d_pad * d_pad * 2 + d_pad * 4)          # W (bf16) + b
    )
    transcendentals = int(n_pad) if l2norm else 0

    kernel = functools.partial(_gnn_stack_kernel, tm=tile_n, l2norm=l2norm,
                               a_resident=a_resident)

    out = pl.pallas_call(
        kernel,
        out_shape=jax.ShapeDtypeStruct((n_pad, d_pad), jnp.float32),
        grid=grid,
        in_specs=[
            pl.BlockSpec(memory_space=pl.ANY),                       # X (HBM, one DMA)
            a_spec,                                                  # A_hat
            pl.BlockSpec((1, d_pad, d_pad), lambda l, i: (l, 0, 0)),  # W_l (bf16)
            pl.BlockSpec((1, 1, d_pad), lambda l, i: (l, 0, 0)),      # b_l
        ],
        out_specs=pl.BlockSpec((n_pad, d_pad), lambda l, i: (0, 0)),  # resident X
        scratch_shapes=scratch_shapes,
        compiler_params=pltpu.CompilerParams(
            # Activations are resident in VMEM across the whole grid (sequential
            # dependency) -> both axes "arbitrary".
            dimension_semantics=("arbitrary", "arbitrary"),
            vmem_limit_bytes=int(vmem_limit_bytes),
        ),
        cost_estimate=pl.CostEstimate(flops=flops,
                                      transcendentals=transcendentals,
                                      bytes_accessed=bytes_accessed),
    )(x_p, a_p, w_stack, b_stack)

    return out[:n, :d]


# ------------------------------- Reference --------------------------------- #

def gnn_stack_stage_ref(node_feature, a_hat, weights, biases, l2norm=True):
    x = node_feature
    for w, b in zip(weights, biases):
        x = jnp.maximum(a_hat @ x @ w + jnp.asarray(b).reshape(1, -1), 0.0)
    if l2norm:
        nrm = jnp.sqrt(jnp.sum(x * x, axis=-1, keepdims=True))
        x = x / jnp.maximum(nrm, 1e-12)
    return x


# --------------------------------- Main ------------------------------------ #

if __name__ == "__main__":
    key = jax.random.PRNGKey(0)

    NUM_NODES = 256
    HIDDEN = 128          # lane-dense feature dim; dim_in == dim_out (see note above)
    NUM_LAYERS = 2

    k_x, k_adj, *k_wb = jax.random.split(key, 2 + 2 * NUM_LAYERS)

    # Node features [N, D]
    x = jax.random.normal(k_x, (NUM_NODES, HIDDEN), dtype=jnp.float32)

    # Deterministic random undirected graph -> symmetric-normalized adjacency
    # A_hat = D^{-1/2} (A + I) D^{-1/2}
    raw = jax.random.uniform(k_adj, (NUM_NODES, NUM_NODES))
    adj = (raw + raw.T) > 1.6
    adj = adj.astype(jnp.float32) + jnp.eye(NUM_NODES, dtype=jnp.float32)
    deg = jnp.sum(adj, axis=-1)
    d_inv_sqrt = 1.0 / jnp.sqrt(deg)
    a_hat = adj * d_inv_sqrt[:, None] * d_inv_sqrt[None, :]

    # Deterministic Glorot-style weights / small random biases per layer
    weights, biases = [], []
    scale = jnp.sqrt(2.0 / (HIDDEN + HIDDEN))
    for i in range(NUM_LAYERS):
        w = scale * jax.random.normal(k_wb[2 * i], (HIDDEN, HIDDEN), dtype=jnp.float32)
        b = 0.1 * jax.random.normal(k_wb[2 * i + 1], (1, HIDDEN), dtype=jnp.float32)
        weights.append(w)
        biases.append(b)

    ref = gnn_stack_stage_ref(x, a_hat, weights, biases, l2norm=True)

    # Path 1: A_hat VMEM-resident (the intended fast path at this size).
    out_res = gnn_stack_stage(x, a_hat, weights, biases, l2norm=True,
                              force_a_resident=True)
    out_res = jax.block_until_ready(out_res)
    assert out_res.shape == (NUM_NODES, HIDDEN)
    err_res = float(jnp.max(jnp.abs(out_res - ref)))
    assert jnp.allclose(out_res, ref, atol=2e-2, rtol=2e-2), \
        f"resident-A path mismatch vs reference (max abs err {err_res})"

    # Path 2: streaming-A fallback with small row tiles (exercises the multi-tile grid
    # and the 3-deep buffered A pipeline).
    out_str = gnn_stack_stage(x, a_hat, weights, biases, l2norm=True,
                              tile_n=128, force_a_resident=False)
    out_str = jax.block_until_ready(out_str)
    assert out_str.shape == (NUM_NODES, HIDDEN)
    err_str = float(jnp.max(jnp.abs(out_str - ref)))
    assert jnp.allclose(out_str, ref, atol=2e-2, rtol=2e-2), \
        f"streaming-A path mismatch vs reference (max abs err {err_str})"

    print("KERNEL_OK")
</pallas_src>

<mosaic_0001>
module attributes {stable_mosaic.version = 11 : i64} {
  func.func @_gnn_stack_kernel(%arg0: i32, %arg1: i32, %arg2: memref<256x128xf32, #tpu.memory_space<any>>, %arg3: memref<256x256xbf16, #tpu.memory_space<any>>, %arg4: memref<1x128x128xbf16, #tpu.memory_space<vmem>>, %arg5: memref<1x1x128xf32, #tpu.memory_space<vmem>>, %arg6: memref<256x128xf32, #tpu.memory_space<vmem>>, %arg7: memref<256x256xbf16, #tpu.memory_space<vmem>>, %arg8: memref<256x128xbf16, #tpu.memory_space<vmem>>, %arg9: memref<2x!tpu.dma_semaphore, #tpu.memory_space<semaphore_mem>>) attributes {dimension_semantics = [#tpu.dimension_semantics<arbitrary>, #tpu.dimension_semantics<arbitrary>], iteration_bounds = array<i64: 2, 1>, scalar_prefetch = 0 : i64, scratch_operands = 3 : i64, tpu.core_type = #tpu.core_type<tc>, window_params = [{}, {}, {transform_indices = @transform_2, window_bounds = array<i64: 1, 128, 128>}, {transform_indices = @transform_3, window_bounds = array<i64: 1, 1, 128>}, {pipeline_mode = #tpu.pipeline_mode<synchronous>, transform_indices = @transform_4, window_bounds = array<i64: 256, 128>}]} {
    %c0_i32 = arith.constant 0 : i32
    %0 = arith.cmpi eq, %arg0, %c0_i32 : i32
    %c0_i32_0 = arith.constant 0 : i32
    %1 = arith.cmpi eq, %arg1, %c0_i32_0 : i32
    %2 = arith.andi %0, %1 : i1
    %3 = arith.extui %2 : i1 to i32
    %c0_i32_1 = arith.constant 0 : i32
    %4 = arith.cmpi ne, %3, %c0_i32_1 : i32
    scf.if %4 {
      %c0_i32_13 = arith.constant 0 : i32
      %26 = tpu.memref_slice %arg9[%c0_i32_13] : memref<2x!tpu.dma_semaphore, #tpu.memory_space<semaphore_mem>> -> memref<1x!tpu.dma_semaphore, #tpu.memory_space<semaphore_mem>>
      %27 = tpu.memref_squeeze %26 : memref<1x!tpu.dma_semaphore, #tpu.memory_space<semaphore_mem>> -> memref<!tpu.dma_semaphore, #tpu.memory_space<semaphore_mem>>
      tpu.enqueue_dma source(%arg2 : memref<256x128xf32, #tpu.memory_space<any>>) target(%arg6 : memref<256x128xf32, #tpu.memory_space<vmem>>) target_semaphore(%27 : memref<!tpu.dma_semaphore, #tpu.memory_space<semaphore_mem>>)
      %c1_i32_14 = arith.constant 1 : i32
      %28 = tpu.memref_slice %arg9[%c1_i32_14] : memref<2x!tpu.dma_semaphore, #tpu.memory_space<semaphore_mem>> -> memref<1x!tpu.dma_semaphore, #tpu.memory_space<semaphore_mem>>
      %29 = tpu.memref_squeeze %28 : memref<1x!tpu.dma_semaphore, #tpu.memory_space<semaphore_mem>> -> memref<!tpu.dma_semaphore, #tpu.memory_space<semaphore_mem>>
      tpu.enqueue_dma source(%arg3 : memref<256x256xbf16, #tpu.memory_space<any>>) target(%arg7 : memref<256x256xbf16, #tpu.memory_space<vmem>>) target_semaphore(%29 : memref<!tpu.dma_semaphore, #tpu.memory_space<semaphore_mem>>)
      %c1_i32_15 = arith.constant 1 : i32
      %30 = tpu.memref_slice %arg9[%c1_i32_15] : memref<2x!tpu.dma_semaphore, #tpu.memory_space<semaphore_mem>> -> memref<1x!tpu.dma_semaphore, #tpu.memory_space<semaphore_mem>>
      %31 = tpu.memref_squeeze %30 : memref<1x!tpu.dma_semaphore, #tpu.memory_space<semaphore_mem>> -> memref<!tpu.dma_semaphore, #tpu.memory_space<semaphore_mem>>
      tpu.wait_dma2 semaphore(%31 : memref<!tpu.dma_semaphore, #tpu.memory_space<semaphore_mem>>) src(%arg3 : memref<256x256xbf16, #tpu.memory_space<any>>) dst(%arg7 : memref<256x256xbf16, #tpu.memory_space<vmem>>)
      %c0_i32_16 = arith.constant 0 : i32
      %32 = tpu.memref_slice %arg9[%c0_i32_16] : memref<2x!tpu.dma_semaphore, #tpu.memory_space<semaphore_mem>> -> memref<1x!tpu.dma_semaphore, #tpu.memory_space<semaphore_mem>>
      %33 = tpu.memref_squeeze %32 : memref<1x!tpu.dma_semaphore, #tpu.memory_space<semaphore_mem>> -> memref<!tpu.dma_semaphore, #tpu.memory_space<semaphore_mem>>
      tpu.wait_dma2 semaphore(%33 : memref<!tpu.dma_semaphore, #tpu.memory_space<semaphore_mem>>) src(%arg2 : memref<256x128xf32, #tpu.memory_space<any>>) dst(%arg6 : memref<256x128xf32, #tpu.memory_space<vmem>>)
    } else {
    }
    %c0_i32_2 = arith.constant 0 : i32
    %5 = arith.cmpi eq, %arg1, %c0_i32_2 : i32
    %6 = arith.extui %5 : i1 to i32
    %c0_i32_3 = arith.constant 0 : i32
    %7 = arith.cmpi ne, %6, %c0_i32_3 : i32
    scf.if %7 {
      %c0_13 = arith.constant 0 : index
      %c0_14 = arith.constant 0 : index
      %26 = vector.load %arg6[%c0_13, %c0_14] : memref<256x128xf32, #tpu.memory_space<vmem>>, vector<256x128xf32>
      %27 = arith.truncf %26 : vector<256x128xf32> to vector<256x128xbf16>
      %c0_15 = arith.constant 0 : index
      %c0_16 = arith.constant 0 : index
      %c0_17 = arith.constant 0 : index
      %28 = vector.load %arg4[%c0_15, %c0_16, %c0_17] : memref<1x128x128xbf16, #tpu.memory_space<vmem>>, vector<1x128x128xbf16>
      %29 = vector.shape_cast %28 : vector<1x128x128xbf16> to vector<128x128xbf16>
      %cst_18 = arith.constant dense<0.000000e+00> : vector<256x128xf32>
      %30 = tpu.matmul %27, %29, %cst_18 {dimension_numbers = #tpu.dot_dimension_numbers<[1], [0], [0], [1], [0, 0, 1, 1], [], []>} : vector<256x128xbf16>, vector<128x128xbf16>, vector<256x128xf32> -> vector<256x128xf32>
      %31 = arith.truncf %30 : vector<256x128xf32> to vector<256x128xbf16>
      %c0_19 = arith.constant 0 : index
      %c0_20 = arith.constant 0 : index
      %32 = vector.load %arg8[%c0_19, %c0_20] : memref<256x128xbf16, #tpu.memory_space<vmem>>, vector<256x128xbf16>
      tpu.vector_store %arg8[%c0_19, %c0_20], %31 {strides = array<i32>} : memref<256x128xbf16, #tpu.memory_space<vmem>>, vector<256x128xbf16>,
    } else {
    }
    %c256_i32 = arith.constant 256 : i32
    %8 = arith.muli %arg1, %c256_i32 : i32
    %9 = tpu.assume_multiple %8, 256 : i32
    %10 = arith.index_cast %9 : i32 to index
    %c0 = arith.constant 0 : index
    %11 = vector.load %arg7[%10, %c0] : memref<256x256xbf16, #tpu.memory_space<vmem>>, vector<256x256xbf16>
    %c0_4 = arith.constant 0 : index
    %c0_5 = arith.constant 0 : index
    %12 = vector.load %arg8[%c0_4, %c0_5] : memref<256x128xbf16, #tpu.memory_space<vmem>>, vector<256x128xbf16>
    %cst = arith.constant dense<0.000000e+00> : vector<256x128xf32>
    %13 = tpu.matmul %11, %12, %cst {dimension_numbers = #tpu.dot_dimension_numbers<[1], [0], [0], [1], [0, 0, 1, 1], [], []>} : vector<256x256xbf16>, vector<256x128xbf16>, vector<256x128xf32> -> vector<256x128xf32>
    %c0_6 = arith.constant 0 : index
    %c0_7 = arith.constant 0 : index
    %c0_8 = arith.constant 0 : index
    %14 = vector.load %arg5[%c0_6, %c0_7, %c0_8] : memref<1x1x128xf32, #tpu.memory_space<vmem>>, vector<1x1x128xf32>
    %15 = vector.shape_cast %14 : vector<1x1x128xf32> to vector<1x128xf32>
    %16 = vector.broadcast %15 : vector<1x128xf32> to vector<256x128xf32>
    %17 = arith.addf %13, %16 : vector<256x128xf32>
    %cst_9 = arith.constant 0.000000e+00 : f32
    %18 = vector.broadcast %cst_9 : f32 to vector<256x128xf32>
    %19 = arith.maximumf %17, %18 : vector<256x128xf32>
    %c1_i32 = arith.constant 1 : i32
    %20 = arith.cmpi eq, %arg0, %c1_i32 : i32
    %21 = arith.extui %20 : i1 to i32
    %c0_i32_10 = arith.constant 0 : i32
    %22 = arith.cmpi ne, %21, %c0_i32_10 : i32
    scf.if %22 {
      %26 = arith.mulf %19, %19 : vector<256x128xf32>
      %cst_13 = arith.constant dense<0.000000e+00> : vector<256xf32>
      %27 = vector.multi_reduction <add>, %26, %cst_13 [1] : vector<256x128xf32> to vector<256xf32>
      %28 = vector.shape_cast %27 : vector<256xf32> to vector<256x1xf32>
      %cst_14 = arith.constant 1.000000e-24 : f32
      %29 = vector.broadcast %cst_14 : f32 to vector<256x1xf32>
      %30 = arith.maximumf %28, %29 : vector<256x1xf32>
      %31 = math.rsqrt %30 : vector<256x1xf32>
      %32 = vector.broadcast %31 : vector<256x1xf32> to vector<256x128xf32>
      %33 = arith.mulf %19, %32 : vector<256x128xf32>
      %34 = arith.index_cast %9 : i32 to index
      %c0_15 = arith.constant 0 : index
      %35 = vector.load %arg6[%34, %c0_15] : memref<256x128xf32, #tpu.memory_space<vmem>>, vector<256x128xf32>
      tpu.vector_store %arg6[%34, %c0_15], %33 {strides = array<i32>} : memref<256x128xf32, #tpu.memory_space<vmem>>, vector<256x128xf32>,
    } else {
    }
    %c1_i32_11 = arith.constant 1 : i32
    %23 = arith.cmpi slt, %arg0, %c1_i32_11 : i32
    %24 = arith.extui %23 : i1 to i32
    %c0_i32_12 = arith.constant 0 : i32
    %25 = arith.cmpi ne, %24, %c0_i32_12 : i32
    scf.if %25 {
      %26 = arith.index_cast %9 : i32 to index
      %c0_13 = arith.constant 0 : index
      %27 = vector.load %arg6[%26, %c0_13] : memref<256x128xf32, #tpu.memory_space<vmem>>, vector<256x128xf32>
      tpu.vector_store %arg6[%26, %c0_13], %19 {strides = array<i32>} : memref<256x128xf32, #tpu.memory_space<vmem>>, vector<256x128xf32>,
    } else {
    }
    return
  }
  func.func @transform_2(%arg0: i32, %arg1: i32) -> (i32, i32, i32) {
    %c0_i32 = arith.constant 0 : i32
    %c0_i32_0 = arith.constant 0 : i32
    %c0_i32_1 = arith.constant 0 : i32
    return %arg0, %c0_i32, %c0_i32_0 : i32, i32, i32
  }
  func.func @transform_3(%arg0: i32, %arg1: i32) -> (i32, i32, i32) {
    %c0_i32 = arith.constant 0 : i32
    %c0_i32_0 = arith.constant 0 : i32
    %c0_i32_1 = arith.constant 0 : i32
    return %arg0, %c0_i32, %c0_i32_0 : i32, i32, i32
  }
  func.func @transform_4(%arg0: i32, %arg1: i32) -> (i32, i32) {
    %c0_i32 = arith.constant 0 : i32
    %c0_i32_0 = arith.constant 0 : i32
    %c0_i32_1 = arith.constant 0 : i32
    return %c0_i32, %c0_i32_0 : i32, i32
  }
}

</mosaic_0001>

<llo_original>
// kernel: tpu_custom_call.1
$region0: #{tpu_custom_call.1}
  #allocation0 [shape = 'u32[]', space=smem, size = 0x4, offset = 0x4, fixed_abs, tag = 'smem constant byte address 0x4 - core index']
  #allocation1 [shape = 'u32[144,128]{1,0:T(1,128)}', space=vmem, size = 0x12000, scoped, tag = 'internal scratch']
  #allocation2 [shape = 'bf16[256,256]{1,0:T(16,128)(2,1)}', space=vmem, size = 0x20000, scoped, tag = 'scratch operand']
  #allocation3 [shape = 'bf16[256,128]{1,0:T(16,128)(2,1)}', space=vmem, size = 0x10000, scoped, tag = 'scratch operand']
  #allocation4 [shape = 's32[2]{0}', space=sflag, size = 0x8, scoped, tag = 'scratch operand']
  #allocation9 [shape = 's32[]', space=sflag, size = 0x4, offset = 0, fixed_abs, tag = 'sflag constant byte address 0x0 - dummy sync flag']
  #allocation10 [shape = 's32[]', space=sflag, size = 0x4, offset = 0, fixed_abs, tag = 'sflag constant byte address 0x0 - dummy sync flag']
  #allocation11 [shape = 'u32[]', space=smem, size = 0x4, offset = 0x44, fixed_abs, tag = 'smem constant byte address 0x44 - assertion arg 0']
  #allocation12 [shape = 'u32[]', space=smem, size = 0x4, offset = 0x48, fixed_abs, tag = 'smem constant byte address 0x48 - assertion arg 1']
  #allocation13 [shape = 's32[]', space=sflag, size = 0x4, offset = 0, fixed_abs, tag = 'sflag constant byte address 0x0 - dummy sync flag']
  %s0 = inlined_call_operand.hbm [shape: f32[256,128], index: 0, kind: input, shape index: {}]
  %s1 = inlined_call_operand.hbm [shape: bf16[256,256], index: 1, kind: input, shape index: {}]
  %s2 = inlined_call_operand.hbm [shape: bf16[2,128,128], index: 2, kind: input, shape index: {}]
  %s3 = inlined_call_operand.vmem [shape: f32[2,1,128], index: 3, kind: input, shape index: {}]
  %s4 = inlined_call_operand.hbm [shape: f32[256,128], index: 4, kind: output, shape index: {}]
  %s5 = sld [smem:[#allocation0]]
  $region65: #{tpu_custom_call.1} parent=0
    _
  %s7 = ssub.s32 1, %s5
  %s8 = scalar_select 0, %s7, %s5
  $region1: #{tpu_custom_call.1} parent=0
    #allocation5 [shape = 'u8[65536]{0}', space=vmem, size = 0x10000, scoped, tag = 'input window, operand 2']
    #allocation6 [shape = 's32[2]{0}', space=sflag, size = 0x8, scoped, tag = 'scoped memory for tpu_custom_call.1']
    #allocation7 [shape = 's32[2]{0}', space=sflag, size = 0x8, scoped, tag = 'scoped memory for tpu_custom_call.1']
    #allocation8 [shape = 'u8[131072]{0}', space=vmem, size = 0x20000, scoped, tag = 'output window, operand 0, single buffered']
    %9 = vsyncpa [#allocation6], 0
    %s10 = scalar_lea.sflag [#allocation6], 1
    %11 = vsyncpa %s10, 0
    %12 = vsyncpa [#allocation7], 0
    loop: start=0, step=1, limit=4
    $region2: #{tpu_custom_call.1} parent=1 // loop_pre_header
      _
    $region3: #{tpu_custom_call.1} parent=1 // loop_header
      %s14 = sphi 0, %s18
      %p15 = scmp.ge.s32.totalorder %s14, 4
      %s21 = sphi 0, %s33
      %s22 = sphi 0, %s29
      %s23 = sphi 0, %s21
      %s24 = sphi 0, %s22
      %s25 = sphi 0, %s23
      %s26 = sphi 0, %s24
      %s36 = sphi 0, %s38
      %s39 = sphi 0, %s36
      %s40 = sphi 0, %s39
      %s56 = sphi 0, %s40
      %s62 = sphi 0, %s64
      %s65 = sphi 0, %s62
      %s66 = sphi 0, %s65
      %s82 = sphi 0, %s66
      %s86 = sphi 0, %s86
      %s88 = sphi 0, %s86
      %s89 = sphi 0, %s88
      %s103 = sphi 0, %s89
    $region4: #{tpu_custom_call.1} parent=1 // loop_header_branch
      %17 = sbr.rel (%p15) target = $region8
    $region5: #{tpu_custom_call.1} parent=1 // loop_body
      %s19 = ssub.s32 %s14, 1
      %s20 = ssub.s32 %s14, 2
      %s27 = sadd.s32 1, %s22
      %p28 = scmp.ge.s32.totalorder %s27, 1
      %s29 = scalar_select %p28, 0, %s27
      %s30 = sadd.s32 1, %s21
      %s31 = scalar_select %p28, %s30, %s21
      %p32 = scmp.ge.s32.totalorder %s31, 2
      %s33 = scalar_select %p32, 0, %s31
      %s34 = ssub.s32 %s21, %s33
      %p35 = scmp.eq.s32.totalorder %s34, 0
      %s37 = sadd.s32 %s36, 1
      %s38 = scalar_select %p35, %s36, %s37
      %p41 = pneg %p35
      %p42 = scmp.eq.s32.totalorder %s14, 1
      %p43 = por %p41, %p42
      %p44 = scmp.ne.s32.totalorder %s36, %s39
      %p45 = scmp.eq.s32.totalorder %s14, 0
      %p46 = por %p44, %p45
      %p47 = scmp.ne.s32.totalorder %s36, %s39
      %p48 = scmp.eq.s32.totalorder %s19, 1
      %p49 = por %p47, %p48
      %p50 = scmp.ne.s32.totalorder %s39, %s40
      %p51 = scmp.eq.s32.totalorder %s19, 0
      %p52 = por %p50, %p51
      %p53 = scmp.ne.s32.totalorder %s39, %s40
      %p54 = scmp.eq.s32.totalorder %s20, 1
      %p55 = por %p53, %p54
      %p57 = scmp.ne.s32.totalorder %s40, %s56
      %p58 = scmp.eq.s32.totalorder %s20, 0
      %p59 = por %p57, %p58
      %s60 = ssub.s32 %s21, %s33
      %p61 = scmp.eq.s32.totalorder %s60, 0
      %s63 = sadd.s32 %s62, 1
      %s64 = scalar_select %p61, %s62, %s63
      %p67 = pneg %p61
      %p68 = scmp.eq.s32.totalorder %s14, 1
      %p69 = por %p67, %p68
      %p70 = scmp.ne.s32.totalorder %s62, %s65
      %p71 = scmp.eq.s32.totalorder %s14, 0
      %p72 = por %p70, %p71
      %p73 = scmp.ne.s32.totalorder %s62, %s65
      %p74 = scmp.eq.s32.totalorder %s19, 1
      %p75 = por %p73, %p74
      %p76 = scmp.ne.s32.totalorder %s65, %s66
      %p77 = scmp.eq.s32.totalorder %s19, 0
      %p78 = por %p76, %p77
      %p79 = scmp.ne.s32.totalorder %s65, %s66
      %p80 = scmp.eq.s32.totalorder %s20, 1
      %p81 = por %p79, %p80
      %p83 = scmp.ne.s32.totalorder %s66, %s82
      %p84 = scmp.eq.s32.totalorder %s20, 0
      %p85 = por %p83, %p84
      %s87 = sadd.s32 %s86, 1
      %p90 = scmp.eq.s32.totalorder %s14, 1
      %p91 = scmp.ne.s32.totalorder %s86, %s88
      %p92 = scmp.eq.s32.totalorder %s14, 0
      %p93 = por %p91, %p92
      %p94 = scmp.ne.s32.totalorder %s86, %s88
      %p95 = scmp.eq.s32.totalorder %s19, 1
      %p96 = por %p94, %p95
      %p97 = scmp.ne.s32.totalorder %s88, %s89
      %p98 = scmp.eq.s32.totalorder %s19, 0
      %p99 = por %p97, %p98
      %p100 = scmp.ne.s32.totalorder %s88, %s89
      %p101 = scmp.eq.s32.totalorder %s20, 1
      %p102 = por %p100, %p101
      %p104 = scmp.ne.s32.totalorder %s89, %s103
      %p105 = scmp.eq.s32.totalorder %s20, 0
      %p106 = por %p104, %p105
      %p107 = scmp.le.s32.totalorder 1, %s14
      %p108 = scmp.lt.s32.totalorder %s14, 3
      %p109 = pnand %p107, %p108
      %p110 = pneg %p109
      // Predicated region
      $region9: #{tpu_custom_call.1} parent=5 // pred_check
        _
      $region10: #{tpu_custom_call.1} parent=5 // pred_check_branch
        %112 = sbr.rel (%p109) target = $region12
      $region11: #{tpu_custom_call.1} parent=5 // pred_region
        %s113 = ssub.s32 %s14, 1
      $region12: #{tpu_custom_call.1} parent=5 // pred_fallthru
        _
      %p114 = scmp.lt.s32.totalorder %s14, 2
      // Predicated region
      $region13: #{tpu_custom_call.1} parent=5 // pred_check
        %p115 = pneg %p114
      $region14: #{tpu_custom_call.1} parent=5 // pred_check_branch
        %117 = sbr.rel (%p115) target = $region16
      $region15: #{tpu_custom_call.1} parent=5 // pred_region
        // Predicated region
        $region17: #{tpu_custom_call.1} parent=15 // pred_check
          %p118 = pneg %p46
        $region18: #{tpu_custom_call.1} parent=15 // pred_check_branch
          %120 = sbr.rel (%p118) target = $region20
        $region19: #{tpu_custom_call.1} parent=15 // pred_region
          %s121 = sand.u32 %s36, 1
          %s122 = scalar_lea.sflag [#allocation6], %s121
          %s123 = sand.u32 %s36, 1
          %s124 = smul.addr %s123, 64
          %s125 = scalar_lea.vmem [#allocation5], %s124
          %s127 = ssub.s32 1024, 1024
          %128 = vsyncadd %s122, %s127
          %s129 = smul.addr %s21, 16
          %s130 = smul.addr %s129, 64
          %s131 = scalar_lea.hbm %s2, %s130
          %s132 = sshll.u32 %s125, 4
          %s133 = int_to_ptr.vmem [resolvable:$true] %s132
          %138 = dma.hbm_to_vmem [thread:$0]  %s131, 1024, %s133, %s122, 64, 64, 4
        $region20: #{tpu_custom_call.1} parent=15 // pred_fallthru
          _
        // Predicated region
        $region21: #{tpu_custom_call.1} parent=15 // pred_check
          %p139 = pneg %p72
        $region22: #{tpu_custom_call.1} parent=15 // pred_check_branch
          %141 = sbr.rel (%p139) target = $region24
        $region23: #{tpu_custom_call.1} parent=15 // pred_region
          %p142 = scmp.lt.s32.totalorder %s21, 1
          %s143 = scalar_select %p142, %s21, 1
          %s144 = scalar_lea.vmem %s3, %s143
        $region24: #{tpu_custom_call.1} parent=15 // pred_fallthru
          _
      $region16: #{tpu_custom_call.1} parent=5 // pred_fallthru
        _
      %p145 = scmp.le.s32.totalorder 1, %s14
      %p146 = scmp.lt.s32.totalorder %s14, 3
      %p147 = pnand %p145, %p146
      %p148 = pneg %p147
      // Predicated region
      $region25: #{tpu_custom_call.1} parent=5 // pred_check
        _
      $region26: #{tpu_custom_call.1} parent=5 // pred_check_branch
        %150 = sbr.rel (%p147) target = $region28
      $region27: #{tpu_custom_call.1} parent=5 // pred_region
        %s151 = ssub.s32 %s14, 1
        %s152 = sand.u32 %s39, 1
        %s153 = scalar_lea.sflag [#allocation6], %s152
        %s154 = sand.u32 %s39, 1
        %s155 = smul.addr %s154, 64
        %s156 = scalar_lea.vmem [#allocation5], %s155
        // Predicated region
        $region29: #{tpu_custom_call.1} parent=27 // pred_check
          %p157 = pneg %p52
        $region30: #{tpu_custom_call.1} parent=27 // pred_check_branch
          %159 = sbr.rel (%p157) target = $region32
        $region31: #{tpu_custom_call.1} parent=27 // pred_region
          %160 = dma.done %s153, 1024
        $region32: #{tpu_custom_call.1} parent=27 // pred_fallthru
          _
        %s161 = sand.u32 %s39, 1
        %s162 = scalar_lea.sflag [#allocation6], %s161
        %s163 = sand.u32 %s39, 1
        %s164 = smul.addr %s163, 64
        %s165 = scalar_lea.vmem [#allocation5], %s164
        %p166 = pneg %p52
        %p167 = pneg %p49
        %p168 = scmp.lt.s32.totalorder %s23, 1
        %s169 = scalar_select %p168, %s23, 1
        %s170 = scalar_lea.vmem %s3, %s169
        %p171 = pneg %p78
        %p172 = pneg %p75
        %p173 = pneg %p99
        %p174 = pneg %p96
        %p175 = scmp.lt.s32.totalorder %s23, 1
        %s176 = scalar_select %p175, %s23, 1
        %s177 = scalar_lea.vmem %s3, %s176
        %p179 = scmp.eq.s32.totalorder %s23, 0
        %p180 = scmp.eq.s32.totalorder %s24, 0
        %p181 = pnand %p179, %p180
        %p182 = pneg %p181
        // Predicated region
        $region33: #{tpu_custom_call.1} parent=27 // pred_check
          _
        $region34: #{tpu_custom_call.1} parent=27 // pred_check_branch
          %184 = sbr.rel (%p181) target = $region36
        $region35: #{tpu_custom_call.1} parent=27 // pred_region
          #allocation14 [shape = 'u32[9]{0}', space=smem, size = 0x24, scoped, tag = 'DMA stride descriptor']
          // Predicated region
          $region37: #{tpu_custom_call.1} parent=35 // pred_check
            _
          $region38: #{tpu_custom_call.1} parent=35 // pred_check_branch
            %186 = sbr.rel target = $region40
          $region39: #{tpu_custom_call.1} parent=35 // pred_region
            %187 = sst [smem:[#allocation11]] [#allocation10]
            %188 = sst [smem:[#allocation12]] [#allocation9]
          $region40: #{tpu_custom_call.1} parent=35 // pred_fallthru
            _
          %190 = shalt.err (0)
          %s192 = sshll.u32 [#allocation8], 4
          %s193 = int_to_ptr.vmem [resolvable:$true] %s192
          %195 = dma.hbm_to_vmem [thread:$0]  %s0, 4096, %s193, [#allocation4]
          %s196 = scalar_lea.sflag [#allocation4], 1
          %s198 = sshll.u32 1, 14
          %s199 = sxor.u32 4294967295, %s198
          %s201 = sld [smem:[#allocation0]]
          %s202 = sadd.s32 2, %s201
          %s204 = sshll.u32 7, 26
          %s205 = sxor.u32 4294967295, %s204
          %s206 = sand.u32 0, %s205
          %s207 = sshll.u32 %s202, 26
          %s208 = sor.u32 %s206, %s207
          %s209 = sshll.u32 [#allocation2], 4
          %s210 = int_to_ptr.vmem [resolvable:$true] %s209
          %213 = sst [smem:[#allocation14]] 256
          %s214 = scalar_lea.smem [#allocation14], 1
          %215 = sst [smem:[%s214]] 256
          %s216 = scalar_lea.smem [#allocation14], 2
          %217 = sst [smem:[%s216]] 2
          %s218 = scalar_lea.smem [#allocation14], 3
          %219 = sst [smem:[%s218]] 64
          %s220 = scalar_lea.smem [#allocation14], 4
          %221 = sst [smem:[%s220]] 128
          %s222 = scalar_lea.smem [#allocation14], 5
          %223 = sst [smem:[%s222]] 2
          %s224 = scalar_lea.smem [#allocation14], 6
          %225 = sst [smem:[%s224]] 128
          %s226 = scalar_lea.smem [#allocation14], 7
          %227 = sst [smem:[%s226]] 64
          %s228 = scalar_lea.smem [#allocation14], 8
          %229 = sst [smem:[%s228]] 4
          %231 = dma.general %s1, 4096, %s210, %s196, [#allocation13], [#allocation14], %s208, 0
          %s232 = smul.u32 4, 32
          %s233 = smul.u32 %s232, 2
          %s234 = sshll.u32 %s233, 4
          %235 = dma.done %s196, %s234
          %s236 = smul.u32 256, 1
          %s237 = sshll.u32 %s236, 4
          %238 = dma.done [#allocation4], %s237
        $region36: #{tpu_custom_call.1} parent=27 // pred_fallthru
          _
        // Predicated region
        $region41: #{tpu_custom_call.1} parent=27 // pred_check
          %p239 = pneg %p180
        $region42: #{tpu_custom_call.1} parent=27 // pred_check_branch
          %241 = sbr.rel (%p239) target = $region44
        $region43: #{tpu_custom_call.1} parent=27 // pred_region
          %v242 = vld [vmem:[#allocation8] sm:$0xff]
          %v243 = vld [vmem:[#allocation8 + $0x8] sm:$0xff]
          %v244 = vld [vmem:[#allocation8 + $0x10] sm:$0xff]
          %v245 = vld [vmem:[#allocation8 + $0x18] sm:$0xff]
          %v246 = vld [vmem:[#allocation8 + $0x20] sm:$0xff]
          %v247 = vld [vmem:[#allocation8 + $0x28] sm:$0xff]
          %v248 = vld [vmem:[#allocation8 + $0x30] sm:$0xff]
          %v249 = vld [vmem:[#allocation8 + $0x38] sm:$0xff]
          %v250 = vld [vmem:[#allocation8 + $0x40] sm:$0xff]
          %v251 = vld [vmem:[#allocation8 + $0x48] sm:$0xff]
          %v252 = vld [vmem:[#allocation8 + $0x50] sm:$0xff]
          %v253 = vld [vmem:[#allocation8 + $0x58] sm:$0xff]
          %v254 = vld [vmem:[#allocation8 + $0x60] sm:$0xff]
          %v255 = vld [vmem:[#allocation8 + $0x68] sm:$0xff]
          %v256 = vld [vmem:[#allocation8 + $0x70] sm:$0xff]
          %v257 = vld [vmem:[#allocation8 + $0x78] sm:$0xff]
          %v258 = vld [vmem:[#allocation8 + $0x80] sm:$0xff]
          %v259 = vld [vmem:[#allocation8 + $0x88] sm:$0xff]
          %v260 = vld [vmem:[#allocation8 + $0x90] sm:$0xff]
          %v261 = vld [vmem:[#allocation8 + $0x98] sm:$0xff]
          %v262 = vld [vmem:[#allocation8 + $0xa0] sm:$0xff]
          %v263 = vld [vmem:[#allocation8 + $0xa8] sm:$0xff]
          %v264 = vld [vmem:[#allocation8 + $0xb0] sm:$0xff]
          %v265 = vld [vmem:[#allocation8 + $0xb8] sm:$0xff]
          %v266 = vld [vmem:[#allocation8 + $0xc0] sm:$0xff]
          %v267 = vld [vmem:[#allocation8 + $0xc8] sm:$0xff]
          %v268 = vld [vmem:[#allocation8 + $0xd0] sm:$0xff]
          %v269 = vld [vmem:[#allocation8 + $0xd8] sm:$0xff]
          %v270 = vld [vmem:[#allocation8 + $0xe0] sm:$0xff]
          %v271 = vld [vmem:[#allocation8 + $0xe8] sm:$0xff]
          %v272 = vld [vmem:[#allocation8 + $0xf0] sm:$0xff]
          %v273 = vld [vmem:[#allocation8 + $0xf8] sm:$0xff]
          %v274 = vpack.c.bf16 %v243, %v242
          %v275 = vpack.c.bf16 %v245, %v244
          %v276 = vpack.c.bf16 %v247, %v246
          %v277 = vpack.c.bf16 %v249, %v248
          %v278 = vpack.c.bf16 %v251, %v250
          %v279 = vpack.c.bf16 %v253, %v252
          %v280 = vpack.c.bf16 %v255, %v254
          %v281 = vpack.c.bf16 %v257, %v256
          %v282 = vpack.c.bf16 %v259, %v258
          %v283 = vpack.c.bf16 %v261, %v260
          %v284 = vpack.c.bf16 %v263, %v262
          %v285 = vpack.c.bf16 %v265, %v264
          %v286 = vpack.c.bf16 %v267, %v266
          %v287 = vpack.c.bf16 %v269, %v268
          %v288 = vpack.c.bf16 %v271, %v270
          %v289 = vpack.c.bf16 %v273, %v272
          %v290 = vld [vmem:[%s156] sm:$0xf]
          %v291 = vld [vmem:[%s156 + $0x4] sm:$0xf]
          %v292 = vld [vmem:[%s156 + $0x8] sm:$0xf]
          %v293 = vld [vmem:[%s156 + $0xc] sm:$0xf]
          %v294 = vld [vmem:[%s156 + $0x10] sm:$0xf]
          %v295 = vld [vmem:[%s156 + $0x14] sm:$0xf]
          %v296 = vld [vmem:[%s156 + $0x18] sm:$0xf]
          %v297 = vld [vmem:[%s156 + $0x1c] sm:$0xf]
          %v298 = vld [vmem:[%s156 + $0x20] sm:$0xf]
          %v299 = vld [vmem:[%s156 + $0x24] sm:$0xf]
          %v300 = vld [vmem:[%s156 + $0x28] sm:$0xf]
          %v301 = vld [vmem:[%s156 + $0x2c] sm:$0xf]
          %v302 = vld [vmem:[%s156 + $0x30] sm:$0xf]
          %v303 = vld [vmem:[%s156 + $0x34] sm:$0xf]
          %v304 = vld [vmem:[%s156 + $0x38] sm:$0xf]
          %v305 = vld [vmem:[%s156 + $0x3c] sm:$0xf]
          %v322 = vunpack.c.l.b16 %v290
          %v323 = vunpack.c.l.b16 %v291
          %v324 = vunpack.c.l.b16 %v292
          %v325 = vunpack.c.l.b16 %v293
          %v326 = vunpack.c.l.b16 %v294
          %v327 = vunpack.c.l.b16 %v295
          %v328 = vunpack.c.l.b16 %v296
          %v329 = vunpack.c.l.b16 %v297
          %v330 = vunpack.c.l.b16 %v298
          %v331 = vunpack.c.l.b16 %v299
          %v332 = vunpack.c.l.b16 %v300
          %v333 = vunpack.c.l.b16 %v301
          %v334 = vunpack.c.l.b16 %v302
          %v335 = vunpack.c.l.b16 %v303
          %v336 = vunpack.c.l.b16 %v304
          %v337 = vunpack.c.l.b16 %v305
          %v338 = vpack.c.b16 %v323, %v322
          %v339 = vpack.c.b16 %v325, %v324
          %v340 = vpack.c.b16 %v327, %v326
          %v341 = vpack.c.b16 %v329, %v328
          %v342 = vpack.c.b16 %v331, %v330
          %v343 = vpack.c.b16 %v333, %v332
          %v344 = vpack.c.b16 %v335, %v334
          %v345 = vpack.c.b16 %v337, %v336
          %354 = vmatprep.subr.bf16.mxu0 0
          %355 = vmatpush1.bf16.msra.mxu0 %v338
          %356 = vmatprep.subr.bf16.mxu0 0
          %357 = vmatpush1.bf16.msra.mxu0 %v339
          %358 = vmatprep.subr.bf16.mxu0 0
          %359 = vmatpush1.bf16.msra.mxu0 %v340
          %360 = vmatprep.subr.bf16.mxu0 0
          %361 = vmatpush1.bf16.msra.mxu0 %v341
          %362 = vmatprep.subr.bf16.mxu0 0
          %363 = vmatpush1.bf16.msra.mxu0 %v342
          %364 = vmatprep.subr.bf16.mxu0 0
          %365 = vmatpush1.bf16.msra.mxu0 %v343
          %366 = vmatprep.subr.bf16.mxu0 0
          %367 = vmatpush1.bf16.msra.mxu0 %v344
          %368 = vmatprep.subr.bf16.mxu0 0
          %369 = vmatpush1.bf16.msra.mxu0 %v345
          %370 = vmatprep.subr.bf16.mxu0 0
          %371 = vmatpush1.bf16.msra.mxu0 0
          %372 = vmatprep.subr.bf16.mxu0 0
          %373 = vmatpush1.bf16.msra.mxu0 0
          %374 = vmatprep.subr.bf16.mxu0 0
          %375 = vmatpush1.bf16.msra.mxu0 0
          %376 = vmatprep.subr.bf16.mxu0 0
          %377 = vmatpush1.bf16.msra.mxu0 0
          %378 = vmatprep.subr.bf16.mxu0 0
          %379 = vmatpush1.bf16.msra.mxu0 0
          %380 = vmatprep.subr.bf16.mxu0 0
          %381 = vmatpush1.bf16.msra.mxu0 0
          %382 = vmatprep.subr.bf16.mxu0 0
          %383 = vmatpush1.bf16.msra.mxu0 0
          %384 = vmatprep.subr.bf16.mxu0 0
          %385 = vmatpush1.bf16.msra.mxu0 0
          %386 = vmatprep.mubr.bf16.mxu0 0
          %387 = vmatmul.mubr.bf16.gmra.mrb[0].mxu0 %v274
          %v388 = vpop.f32.mrb[0].mxu0
          %v389 = vadd.f32 0.0, %v388
          %v390 = vpop.f32.mrb[0].mxu0
          %v391 = vpop.f32.mrb[0].mxu0
          %v392 = vadd.f32 0.0, %v391
          %v393 = vpop.f32.mrb[0].mxu0
          %394 = vmatprep.mubr.bf16.mxu0 0
          %395 = vmatmul.mubr.bf16.gmra.mrb[0].mxu0 %v275
          %v396 = vpop.f32.mrb[0].mxu0
          %v397 = vadd.f32 0.0, %v396
          %v398 = vpop.f32.mrb[0].mxu0
          %v399 = vpop.f32.mrb[0].mxu0
          %v400 = vadd.f32 0.0, %v399
          %v401 = vpop.f32.mrb[0].mxu0
          %402 = vmatprep.mubr.bf16.mxu0 0
          %403 = vmatmul.mubr.bf16.gmra.mrb[0].mxu0 %v276
          %v404 = vpop.f32.mrb[0].mxu0
          %v405 = vadd.f32 0.0, %v404
          %v406 = vpop.f32.mrb[0].mxu0
          %v407 = vpop.f32.mrb[0].mxu0
          %v408 = vadd.f32 0.0, %v407
          %v409 = vpop.f32.mrb[0].mxu0
          %410 = vmatprep.mubr.bf16.mxu0 0
          %411 = vmatmul.mubr.bf16.gmra.mrb[0].mxu0 %v277
          %v412 = vpop.f32.mrb[0].mxu0
          %v413 = vadd.f32 0.0, %v412
          %v414 = vpop.f32.mrb[0].mxu0
          %v415 = vpop.f32.mrb[0].mxu0
          %v416 = vadd.f32 0.0, %v415
          %v417 = vpop.f32.mrb[0].mxu0
          %418 = vmatprep.mubr.bf16.mxu0 0
          %419 = vmatmul.mubr.bf16.gmra.mrb[0].mxu0 %v278
          %v420 = vpop.f32.mrb[0].mxu0
          %v421 = vadd.f32 0.0, %v420
          %v422 = vpop.f32.mrb[0].mxu0
          %v423 = vpop.f32.mrb[0].mxu0
          %v424 = vadd.f32 0.0, %v423
          %v425 = vpop.f32.mrb[0].mxu0
          %426 = vmatprep.mubr.bf16.mxu0 0
          %427 = vmatmul.mubr.bf16.gmra.mrb[0].mxu0 %v279
          %v428 = vpop.f32.mrb[0].mxu0
          %v429 = vadd.f32 0.0, %v428
          %v430 = vpop.f32.mrb[0].mxu0
          %v431 = vpop.f32.mrb[0].mxu0
          %v432 = vadd.f32 0.0, %v431
          %v433 = vpop.f32.mrb[0].mxu0
          %434 = vmatprep.mubr.bf16.mxu0 0
          %435 = vmatmul.mubr.bf16.gmra.mrb[0].mxu0 %v280
          %v436 = vpop.f32.mrb[0].mxu0
          %v437 = vadd.f32 0.0, %v436
          %v438 = vpop.f32.mrb[0].mxu0
          %v439 = vpop.f32.mrb[0].mxu0
          %v440 = vadd.f32 0.0, %v439
          %v441 = vpop.f32.mrb[0].mxu0
          %442 = vmatprep.mubr.bf16.mxu0 0
          %443 = vmatmul.mubr.bf16.gmra.mrb[0].mxu0 %v281
          %v444 = vpop.f32.mrb[0].mxu0
          %v445 = vadd.f32 0.0, %v444
          %v446 = vpop.f32.mrb[0].mxu0
          %v447 = vpop.f32.mrb[0].mxu0
          %v448 = vadd.f32 0.0, %v447
          %v449 = vpop.f32.mrb[0].mxu0
          %450 = vmatprep.mubr.bf16.mxu0 0
          %451 = vmatmul.mubr.bf16.gmra.mrb[0].mxu0 %v282
          %v452 = vpop.f32.mrb[0].mxu0
          %v453 = vadd.f32 0.0, %v452
          %v454 = vpop.f32.mrb[0].mxu0
          %v455 = vpop.f32.mrb[0].mxu0
          %v456 = vadd.f32 0.0, %v455
          %v457 = vpop.f32.mrb[0].mxu0
          %458 = vmatprep.mubr.bf16.mxu0 0
          %459 = vmatmul.mubr.bf16.gmra.mrb[0].mxu0 %v283
          %v460 = vpop.f32.mrb[0].mxu0
          %v461 = vadd.f32 0.0, %v460
          %v462 = vpop.f32.mrb[0].mxu0
          %v463 = vpop.f32.mrb[0].mxu0
          %v464 = vadd.f32 0.0, %v463
          %v465 = vpop.f32.mrb[0].mxu0
          %466 = vmatprep.mubr.bf16.mxu0 0
          %467 = vmatmul.mubr.bf16.gmra.mrb[0].mxu0 %v284
          %v468 = vpop.f32.mrb[0].mxu0
          %v469 = vadd.f32 0.0, %v468
          %v470 = vpop.f32.mrb[0].mxu0
          %v471 = vpop.f32.mrb[0].mxu0
          %v472 = vadd.f32 0.0, %v471
          %v473 = vpop.f32.mrb[0].mxu0
          %474 = vmatprep.mubr.bf16.mxu0 0
          %475 = vmatmul.mubr.bf16.gmra.mrb[0].mxu0 %v285
          %v476 = vpop.f32.mrb[0].mxu0
          %v477 = vadd.f32 0.0, %v476
          %v478 = vpop.f32.mrb[0].mxu0
          %v479 = vpop.f32.mrb[0].mxu0
          %v480 = vadd.f32 0.0, %v479
          %v481 = vpop.f32.mrb[0].mxu0
          %482 = vmatprep.mubr.bf16.mxu0 0
          %483 = vmatmul.mubr.bf16.gmra.mrb[0].mxu0 %v286
          %v484 = vpop.f32.mrb[0].mxu0
          %v485 = vadd.f32 0.0, %v484
          %v486 = vpop.f32.mrb[0].mxu0
          %v487 = vpop.f32.mrb[0].mxu0
          %v488 = vadd.f32 0.0, %v487
          %v489 = vpop.f32.mrb[0].mxu0
          %490 = vmatprep.mubr.bf16.mxu0 0
          %491 = vmatmul.mubr.bf16.gmra.mrb[0].mxu0 %v287
          %v492 = vpop.f32.mrb[0].mxu0
          %v493 = vadd.f32 0.0, %v492
          %v494 = vpop.f32.mrb[0].mxu0
          %v495 = vpop.f32.mrb[0].mxu0
          %v496 = vadd.f32 0.0, %v495
          %v497 = vpop.f32.mrb[0].mxu0
          %498 = vmatprep.mubr.bf16.mxu0 0
          %499 = vmatmul.mubr.bf16.gmra.mrb[0].mxu0 %v288
          %v500 = vpop.f32.mrb[0].mxu0
          %v501 = vadd.f32 0.0, %v500
          %v502 = vpop.f32.mrb[0].mxu0
          %v503 = vpop.f32.mrb[0].mxu0
          %v504 = vadd.f32 0.0, %v503
          %v505 = vpop.f32.mrb[0].mxu0
          %506 = vmatprep.mubr.bf16.mxu0 0
          %507 = vmatmul.mubr.bf16.gmra.mrb[0].mxu0 %v289
          %v508 = vpop.f32.mrb[0].mxu0
          %v509 = vadd.f32 0.0, %v508
          %v510 = vpop.f32.mrb[0].mxu0
          %v511 = vpop.f32.mrb[0].mxu0
          %v512 = vadd.f32 0.0, %v511
          %v513 = vpop.f32.mrb[0].mxu0
          %514 = vdwg.mxu0
          %v515 = vpack.c.bf16 %v392, %v389
          %v516 = vpack.c.bf16 %v400, %v397
          %v517 = vpack.c.bf16 %v408, %v405
          %v518 = vpack.c.bf16 %v416, %v413
          %v519 = vpack.c.bf16 %v424, %v421
          %v520 = vpack.c.bf16 %v432, %v429
          %v521 = vpack.c.bf16 %v440, %v437
          %v522 = vpack.c.bf16 %v448, %v445
          %v523 = vpack.c.bf16 %v456, %v453
          %v524 = vpack.c.bf16 %v464, %v461
          %v525 = vpack.c.bf16 %v472, %v469
          %v526 = vpack.c.bf16 %v480, %v477
          %v527 = vpack.c.bf16 %v488, %v485
          %v528 = vpack.c.bf16 %v496, %v493
          %v529 = vpack.c.bf16 %v504, %v501
          %v530 = vpack.c.bf16 %v512, %v509
          %531 = vst [vmem:[#allocation3] sm:$0xff] %v515
          %532 = vst [vmem:[#allocation3 + $0x8] sm:$0xff] %v516
          %533 = vst [vmem:[#allocation3 + $0x10] sm:$0xff] %v517
          %534 = vst [vmem:[#allocation3 + $0x18] sm:$0xff] %v518
          %535 = vst [vmem:[#allocation3 + $0x20] sm:$0xff] %v519
          %536 = vst [vmem:[#allocation3 + $0x28] sm:$0xff] %v520
          %537 = vst [vmem:[#allocation3 + $0x30] sm:$0xff] %v521
          %538 = vst [vmem:[#allocation3 + $0x38] sm:$0xff] %v522
          %539 = vst [vmem:[#allocation3 + $0x40] sm:$0xff] %v523
          %540 = vst [vmem:[#allocation3 + $0x48] sm:$0xff] %v524
          %541 = vst [vmem:[#allocation3 + $0x50] sm:$0xff] %v525
          %542 = vst [vmem:[#allocation3 + $0x58] sm:$0xff] %v526
          %543 = vst [vmem:[#allocation3 + $0x60] sm:$0xff] %v527
          %544 = vst [vmem:[#allocation3 + $0x68] sm:$0xff] %v528
          %545 = vst [vmem:[#allocation3 + $0x70] sm:$0xff] %v529
          %546 = vst [vmem:[#allocation3 + $0x78] sm:$0xff] %v530
        $region44: #{tpu_custom_call.1} parent=27 // pred_fallthru
          _
        %s547 = smul.u32 %s24, 256
        %s548 = sshra.s32 %s547, 4
        %s549 = sand.u32 %s547, 15
        %s550 = smul.u32 %s548, 2
        %s551 = smul.addr %s550, 8
        %s552 = scalar_lea.vmem [#allocation2], %s551
        %v553 = vld [vmem:[%s552] sm:$0xff]
        %v554 = vld [vmem:[%s552 + $0x8] sm:$0xff]
        %v555 = vld [vmem:[%s552 + $0x10] sm:$0xff]
        %v556 = vld [vmem:[%s552 + $0x18] sm:$0xff]
        %v557 = vld [vmem:[%s552 + $0x20] sm:$0xff]
        %v558 = vld [vmem:[%s552 + $0x28] sm:$0xff]
        %v559 = vld [vmem:[%s552 + $0x30] sm:$0xff]
        %v560 = vld [vmem:[%s552 + $0x38] sm:$0xff]
        %v561 = vld [vmem:[%s552 + $0x40] sm:$0xff]
        %v562 = vld [vmem:[%s552 + $0x48] sm:$0xff]
        %v563 = vld [vmem:[%s552 + $0x50] sm:$0xff]
        %v564 = vld [vmem:[%s552 + $0x58] sm:$0xff]
        %v565 = vld [vmem:[%s552 + $0x60] sm:$0xff]
        %v566 = vld [vmem:[%s552 + $0x68] sm:$0xff]
        %v567 = vld [vmem:[%s552 + $0x70] sm:$0xff]
        %v568 = vld [vmem:[%s552 + $0x78] sm:$0xff]
        %v569 = vld [vmem:[%s552 + $0x80] sm:$0xff]
        %v570 = vld [vmem:[%s552 + $0x88] sm:$0xff]
        %v571 = vld [vmem:[%s552 + $0x90] sm:$0xff]
        %v572 = vld [vmem:[%s552 + $0x98] sm:$0xff]
        %v573 = vld [vmem:[%s552 + $0xa0] sm:$0xff]
        %v574 = vld [vmem:[%s552 + $0xa8] sm:$0xff]
        %v575 = vld [vmem:[%s552 + $0xb0] sm:$0xff]
        %v576 = vld [vmem:[%s552 + $0xb8] sm:$0xff]
        %v577 = vld [vmem:[%s552 + $0xc0] sm:$0xff]
        %v578 = vld [vmem:[%s552 + $0xc8] sm:$0xff]
        %v579 = vld [vmem:[%s552 + $0xd0] sm:$0xff]
        %v580 = vld [vmem:[%s552 + $0xd8] sm:$0xff]
        %v581 = vld [vmem:[%s552 + $0xe0] sm:$0xff]
        %v582 = vld [vmem:[%s552 + $0xe8] sm:$0xff]
        %v583 = vld [vmem:[%s552 + $0xf0] sm:$0xff]
        %v584 = vld [vmem:[%s552 + $0xf8] sm:$0xff]
        %v585 = vld [vmem:[#allocation3] sm:$0xff]
        %v586 = vld [vmem:[#allocation3 + $0x8] sm:$0xff]
        %v587 = vld [vmem:[#allocation3 + $0x10] sm:$0xff]
        %v588 = vld [vmem:[#allocation3 + $0x18] sm:$0xff]
        %v589 = vld [vmem:[#allocation3 + $0x20] sm:$0xff]
        %v590 = vld [vmem:[#allocation3 + $0x28] sm:$0xff]
        %v591 = vld [vmem:[#allocation3 + $0x30] sm:$0xff]
        %v592 = vld [vmem:[#allocation3 + $0x38] sm:$0xff]
        %v593 = vld [vmem:[#allocation3 + $0x40] sm:$0xff]
        %v594 = vld [vmem:[#allocation3 + $0x48] sm:$0xff]
        %v595 = vld [vmem:[#allocation3 + $0x50] sm:$0xff]
        %v596 = vld [vmem:[#allocation3 + $0x58] sm:$0xff]
        %v597 = vld [vmem:[#allocation3 + $0x60] sm:$0xff]
        %v598 = vld [vmem:[#allocation3 + $0x68] sm:$0xff]
        %v599 = vld [vmem:[#allocation3 + $0x70] sm:$0xff]
        %v600 = vld [vmem:[#allocation3 + $0x78] sm:$0xff]
        %v601 = vld [vmem:[%s177] sm:$0x1]
        %v603 = vlaneseq
        %v604 = vshrl.u32 %v603, 7
        %v605 = vsub.s32 0, %v604
        %v606 = vrot.slane %v601, %v605
        %608 = vmatprep.subr.bf16.mxu0 0
        %609 = vmatpush1.bf16.msra.mxu0 %v585
        %610 = vmatprep.subr.bf16.mxu0 0
        %611 = vmatpush1.bf16.msra.mxu0 %v586
        %612 = vmatprep.subr.bf16.mxu0 0
        %613 = vmatpush1.bf16.msra.mxu0 %v587
        %614 = vmatprep.subr.bf16.mxu0 0
        %615 = vmatpush1.bf16.msra.mxu0 %v588
        %616 = vmatprep.subr.bf16.mxu0 0
        %617 = vmatpush1.bf16.msra.mxu0 %v589
        %618 = vmatprep.subr.bf16.mxu0 0
        %619 = vmatpush1.bf16.msra.mxu0 %v590
        %620 = vmatprep.subr.bf16.mxu0 0
        %621 = vmatpush1.bf16.msra.mxu0 %v591
        %622 = vmatprep.subr.bf16.mxu0 0
        %623 = vmatpush1.bf16.msra.mxu0 %v592
        %624 = vmatprep.subr.bf16.mxu0 0
        %625 = vmatpush1.bf16.msra.mxu0 %v593
        %626 = vmatprep.subr.bf16.mxu0 0
        %627 = vmatpush1.bf16.msra.mxu0 %v594
        %628 = vmatprep.subr.bf16.mxu0 0
        %629 = vmatpush1.bf16.msra.mxu0 %v595
        %630 = vmatprep.subr.bf16.mxu0 0
        %631 = vmatpush1.bf16.msra.mxu0 %v596
        %632 = vmatprep.subr.bf16.mxu0 0
        %633 = vmatpush1.bf16.msra.mxu0 %v597
        %634 = vmatprep.subr.bf16.mxu0 0
        %635 = vmatpush1.bf16.msra.mxu0 %v598
        %636 = vmatprep.subr.bf16.mxu0 0
        %637 = vmatpush1.bf16.msra.mxu0 %v599
        %638 = vmatprep.subr.bf16.mxu0 0
        %639 = vmatpush1.bf16.msra.mxu0 %v600
        %640 = vmatprep.mubr.bf16.mxu0 %v554
        %641 = vmatmul.mubr.bf16.gmra.mrb[0].mxu0 %v553
        %v642 = vpop.f32.mrb[0].mxu0
        %v643 = vadd.f32 %v606, %v642
        %v644 = vpop.f32.mrb[0].mxu0
        %v645 = vpop.f32.mrb[0].mxu0
        %v646 = vadd.f32 %v606, %v645
        %v647 = vpop.f32.mrb[0].mxu0
        %648 = vmatprep.mubr.bf16.mxu0 %v556
        %649 = vmatmul.mubr.bf16.gmra.mrb[0].mxu0 %v555
        %v650 = vpop.f32.mrb[0].mxu0
        %v651 = vadd.f32 %v606, %v650
        %v652 = vpop.f32.mrb[0].mxu0
        %v653 = vpop.f32.mrb[0].mxu0
        %v654 = vadd.f32 %v606, %v653
        %v655 = vpop.f32.mrb[0].mxu0
        %656 = vmatprep.mubr.bf16.mxu0 %v558
        %657 = vmatmul.mubr.bf16.gmra.mrb[0].mxu0 %v557
        %v658 = vpop.f32.mrb[0].mxu0
        %v659 = vadd.f32 %v606, %v658
        %v660 = vpop.f32.mrb[0].mxu0
        %v661 = vpop.f32.mrb[0].mxu0
        %v662 = vadd.f32 %v606, %v661
        %v663 = vpop.f32.mrb[0].mxu0
        %664 = vmatprep.mubr.bf16.mxu0 %v560
        %665 = vmatmul.mubr.bf16.gmra.mrb[0].mxu0 %v559
        %v666 = vpop.f32.mrb[0].mxu0
        %v667 = vadd.f32 %v606, %v666
        %v668 = vpop.f32.mrb[0].mxu0
        %v669 = vpop.f32.mrb[0].mxu0
        %v670 = vadd.f32 %v606, %v669
        %v671 = vpop.f32.mrb[0].mxu0
        %672 = vmatprep.mubr.bf16.mxu0 %v562
        %673 = vmatmul.mubr.bf16.gmra.mrb[0].mxu0 %v561
        %v674 = vpop.f32.mrb[0].mxu0
        %v675 = vadd.f32 %v606, %v674
        %v676 = vpop.f32.mrb[0].mxu0
        %v677 = vpop.f32.mrb[0].mxu0
        %v678 = vadd.f32 %v606, %v677
        %v679 = vpop.f32.mrb[0].mxu0
        %680 = vmatprep.mubr.bf16.mxu0 %v564
        %681 = vmatmul.mubr.bf16.gmra.mrb[0].mxu0 %v563
        %v682 = vpop.f32.mrb[0].mxu0
        %v683 = vadd.f32 %v606, %v682
        %v684 = vpop.f32.mrb[0].mxu0
        %v685 = vpop.f32.mrb[0].mxu0
        %v686 = vadd.f32 %v606, %v685
        %v687 = vpop.f32.mrb[0].mxu0
        %688 = vmatprep.mubr.bf16.mxu0 %v566
        %689 = vmatmul.mubr.bf16.gmra.mrb[0].mxu0 %v565
        %v690 = vpop.f32.mrb[0].mxu0
        %v691 = vadd.f32 %v606, %v690
        %v692 = vpop.f32.mrb[0].mxu0
        %v693 = vpop.f32.mrb[0].mxu0
        %v694 = vadd.f32 %v606, %v693
        %v695 = vpop.f32.mrb[0].mxu0
        %696 = vmatprep.mubr.bf16.mxu0 %v568
        %697 = vmatmul.mubr.bf16.gmra.mrb[0].mxu0 %v567
        %v698 = vpop.f32.mrb[0].mxu0
        %v699 = vadd.f32 %v606, %v698
        %v700 = vpop.f32.mrb[0].mxu0
        %v701 = vpop.f32.mrb[0].mxu0
        %v702 = vadd.f32 %v606, %v701
        %v703 = vpop.f32.mrb[0].mxu0
        %704 = vmatprep.mubr.bf16.mxu0 %v570
        %705 = vmatmul.mubr.bf16.gmra.mrb[0].mxu0 %v569
        %v706 = vpop.f32.mrb[0].mxu0
        %v707 = vadd.f32 %v606, %v706
        %v708 = vpop.f32.mrb[0].mxu0
        %v709 = vpop.f32.mrb[0].mxu0
        %v710 = vadd.f32 %v606, %v709
        %v711 = vpop.f32.mrb[0].mxu0
        %712 = vmatprep.mubr.bf16.mxu0 %v572
        %713 = vmatmul.mubr.bf16.gmra.mrb[0].mxu0 %v571
        %v714 = vpop.f32.mrb[0].mxu0
        %v715 = vadd.f32 %v606, %v714
        %v716 = vpop.f32.mrb[0].mxu0
        %v717 = vpop.f32.mrb[0].mxu0
        %v718 = vadd.f32 %v606, %v717
        %v719 = vpop.f32.mrb[0].mxu0
        %720 = vmatprep.mubr.bf16.mxu0 %v574
        %721 = vmatmul.mubr.bf16.gmra.mrb[0].mxu0 %v573
        %v722 = vpop.f32.mrb[0].mxu0
        %v723 = vadd.f32 %v606, %v722
        %v724 = vpop.f32.mrb[0].mxu0
        %v725 = vpop.f32.mrb[0].mxu0
        %v726 = vadd.f32 %v606, %v725
        %v727 = vpop.f32.mrb[0].mxu0
        %728 = vmatprep.mubr.bf16.mxu0 %v576
        %729 = vmatmul.mubr.bf16.gmra.mrb[0].mxu0 %v575
        %v730 = vpop.f32.mrb[0].mxu0
        %v731 = vadd.f32 %v606, %v730
        %v732 = vpop.f32.mrb[0].mxu0
        %v733 = vpop.f32.mrb[0].mxu0
        %v734 = vadd.f32 %v606, %v733
        %v735 = vpop.f32.mrb[0].mxu0
        %736 = vmatprep.mubr.bf16.mxu0 %v578
        %737 = vmatmul.mubr.bf16.gmra.mrb[0].mxu0 %v577
        %v738 = vpop.f32.mrb[0].mxu0
        %v739 = vadd.f32 %v606, %v738
        %v740 = vpop.f32.mrb[0].mxu0
        %v741 = vpop.f32.mrb[0].mxu0
        %v742 = vadd.f32 %v606, %v741
        %v743 = vpop.f32.mrb[0].mxu0
        %744 = vmatprep.mubr.bf16.mxu0 %v580
        %745 = vmatmul.mubr.bf16.gmra.mrb[0].mxu0 %v579
        %v746 = vpop.f32.mrb[0].mxu0
        %v747 = vadd.f32 %v606, %v746
        %v748 = vpop.f32.mrb[0].mxu0
        %v749 = vpop.f32.mrb[0].mxu0
        %v750 = vadd.f32 %v606, %v749
        %v751 = vpop.f32.mrb[0].mxu0
        %752 = vmatprep.mubr.bf16.mxu0 %v582
        %753 = vmatmul.mubr.bf16.gmra.mrb[0].mxu0 %v581
        %v754 = vpop.f32.mrb[0].mxu0
        %v755 = vadd.f32 %v606, %v754
        %v756 = vpop.f32.mrb[0].mxu0
        %v757 = vpop.f32.mrb[0].mxu0
        %v758 = vadd.f32 %v606, %v757
        %v759 = vpop.f32.mrb[0].mxu0
        %760 = vmatprep.mubr.bf16.mxu0 %v584
        %761 = vmatmul.mubr.bf16.gmra.mrb[0].mxu0 %v583
        %v762 = vpop.f32.mrb[0].mxu0
        %v763 = vadd.f32 %v606, %v762
        %v764 = vpop.f32.mrb[0].mxu0
        %v765 = vpop.f32.mrb[0].mxu0
        %v766 = vadd.f32 %v606, %v765
        %v767 = vpop.f32.mrb[0].mxu0
        %768 = vdwg.mxu0
        %v769 = vmax.f32 %v643, 0.0
        %v770 = vmax.f32 %v646, 0.0
        %v771 = vmax.f32 %v651, 0.0
        %v772 = vmax.f32 %v654, 0.0
        %v773 = vmax.f32 %v659, 0.0
        %v774 = vmax.f32 %v662, 0.0
        %v775 = vmax.f32 %v667, 0.0
        %v776 = vmax.f32 %v670, 0.0
        %v777 = vmax.f32 %v675, 0.0
        %v778 = vmax.f32 %v678, 0.0
        %v779 = vmax.f32 %v683, 0.0
        %v780 = vmax.f32 %v686, 0.0
        %v781 = vmax.f32 %v691, 0.0
        %v782 = vmax.f32 %v694, 0.0
        %v783 = vmax.f32 %v699, 0.0
        %v784 = vmax.f32 %v702, 0.0
        %v785 = vmax.f32 %v707, 0.0
        %v786 = vmax.f32 %v710, 0.0
        %v787 = vmax.f32 %v715, 0.0
        %v788 = vmax.f32 %v718, 0.0
        %v789 = vmax.f32 %v723, 0.0
        %v790 = vmax.f32 %v726, 0.0
        %v791 = vmax.f32 %v731, 0.0
        %v792 = vmax.f32 %v734, 0.0
        %v793 = vmax.f32 %v739, 0.0
        %v794 = vmax.f32 %v742, 0.0
        %v795 = vmax.f32 %v747, 0.0
        %v796 = vmax.f32 %v750, 0.0
        %v797 = vmax.f32 %v755, 0.0
        %v798 = vmax.f32 %v758, 0.0
        %v799 = vmax.f32 %v763, 0.0
        %v800 = vmax.f32 %v766, 0.0
        %p801 = scmp.eq.s32.totalorder %s23, 1
        // Predicated region
        $region45: #{tpu_custom_call.1} parent=27 // pred_check
          %p802 = pneg %p801
        $region46: #{tpu_custom_call.1} parent=27 // pred_check_branch
          %804 = sbr.rel (%p802) target = $region48
        $region47: #{tpu_custom_call.1} parent=27 // pred_region
          %v805 = vmul.f32 %v769, %v769
          %v806 = vmul.f32 %v770, %v770
          %v807 = vmul.f32 %v771, %v771
          %v808 = vmul.f32 %v772, %v772
          %v809 = vmul.f32 %v773, %v773
          %v810 = vmul.f32 %v774, %v774
          %v811 = vmul.f32 %v775, %v775
          %v812 = vmul.f32 %v776, %v776
          %v813 = vmul.f32 %v777, %v777
          %v814 = vmul.f32 %v778, %v778
          %v815 = vmul.f32 %v779, %v779
          %v816 = vmul.f32 %v780, %v780
          %v817 = vmul.f32 %v781, %v781
          %v818 = vmul.f32 %v782, %v782
          %v819 = vmul.f32 %v783, %v783
          %v820 = vmul.f32 %v784, %v784
          %v821 = vmul.f32 %v785, %v785
          %v822 = vmul.f32 %v786, %v786
          %v823 = vmul.f32 %v787, %v787
          %v824 = vmul.f32 %v788, %v788
          %v825 = vmul.f32 %v789, %v789
          %v826 = vmul.f32 %v790, %v790
          %v827 = vmul.f32 %v791, %v791
          %v828 = vmul.f32 %v792, %v792
          %v829 = vmul.f32 %v793, %v793
          %v830 = vmul.f32 %v794, %v794
          %v831 = vmul.f32 %v795, %v795
          %v832 = vmul.f32 %v796, %v796
          %v833 = vmul.f32 %v797, %v797
          %v834 = vmul.f32 %v798, %v798
          %v835 = vmul.f32 %v799, %v799
          %v836 = vmul.f32 %v800, %v800
          %837 = vadd.xlane.f32.xlu0 %v805
          %v838 = vpop.xlane.xlu0 %837
          %839 = vadd.xlane.f32.xlu0 %v806
          %v840 = vpop.xlane.xlu0 %839
          %841 = vadd.xlane.f32.xlu0 %v807
          %v842 = vpop.xlane.xlu0 %841
          %843 = vadd.xlane.f32.xlu0 %v808
          %v844 = vpop.xlane.xlu0 %843
          %845 = vadd.xlane.f32.xlu0 %v809
          %v846 = vpop.xlane.xlu0 %845
          %847 = vadd.xlane.f32.xlu0 %v810
          %v848 = vpop.xlane.xlu0 %847
          %849 = vadd.xlane.f32.xlu0 %v811
          %v850 = vpop.xlane.xlu0 %849
          %851 = vadd.xlane.f32.xlu0 %v812
          %v852 = vpop.xlane.xlu0 %851
          %853 = vadd.xlane.f32.xlu0 %v813
          %v854 = vpop.xlane.xlu0 %853
          %855 = vadd.xlane.f32.xlu0 %v814
          %v856 = vpop.xlane.xlu0 %855
          %857 = vadd.xlane.f32.xlu0 %v815
          %v858 = vpop.xlane.xlu0 %857
          %859 = vadd.xlane.f32.xlu0 %v816
          %v860 = vpop.xlane.xlu0 %859
          %861 = vadd.xlane.f32.xlu0 %v817
          %v862 = vpop.xlane.xlu0 %861
          %863 = vadd.xlane.f32.xlu0 %v818
          %v864 = vpop.xlane.xlu0 %863
          %865 = vadd.xlane.f32.xlu0 %v819
          %v866 = vpop.xlane.xlu0 %865
          %867 = vadd.xlane.f32.xlu0 %v820
          %v868 = vpop.xlane.xlu0 %867
          %869 = vadd.xlane.f32.xlu0 %v821
          %v870 = vpop.xlane.xlu0 %869
          %871 = vadd.xlane.f32.xlu0 %v822
          %v872 = vpop.xlane.xlu0 %871
          %873 = vadd.xlane.f32.xlu0 %v823
          %v874 = vpop.xlane.xlu0 %873
          %875 = vadd.xlane.f32.xlu0 %v824
          %v876 = vpop.xlane.xlu0 %875
          %877 = vadd.xlane.f32.xlu0 %v825
          %v878 = vpop.xlane.xlu0 %877
          %879 = vadd.xlane.f32.xlu0 %v826
          %v880 = vpop.xlane.xlu0 %879
          %881 = vadd.xlane.f32.xlu0 %v827
          %v882 = vpop.xlane.xlu0 %881
          %883 = vadd.xlane.f32.xlu0 %v828
          %v884 = vpop.xlane.xlu0 %883
          %885 = vadd.xlane.f32.xlu0 %v829
          %v886 = vpop.xlane.xlu0 %885
          %887 = vadd.xlane.f32.xlu0 %v830
          %v888 = vpop.xlane.xlu0 %887
          %889 = vadd.xlane.f32.xlu0 %v831
          %v890 = vpop.xlane.xlu0 %889
          %891 = vadd.xlane.f32.xlu0 %v832
          %v892 = vpop.xlane.xlu0 %891
          %893 = vadd.xlane.f32.xlu0 %v833
          %v894 = vpop.xlane.xlu0 %893
          %895 = vadd.xlane.f32.xlu0 %v834
          %v896 = vpop.xlane.xlu0 %895
          %897 = vadd.xlane.f32.xlu0 %v835
          %v898 = vpop.xlane.xlu0 %897
          %899 = vadd.xlane.f32.xlu0 %v836
          %v900 = vpop.xlane.xlu0 %899
          %v901 = vmax.f32 %v838, 1e-24
          %v902 = vmax.f32 %v840, 1e-24
          %v903 = vmax.f32 %v842, 1e-24
          %v904 = vmax.f32 %v844, 1e-24
          %v905 = vmax.f32 %v846, 1e-24
          %v906 = vmax.f32 %v848, 1e-24
          %v907 = vmax.f32 %v850, 1e-24
          %v908 = vmax.f32 %v852, 1e-24
          %v909 = vmax.f32 %v854, 1e-24
          %v910 = vmax.f32 %v856, 1e-24
          %v911 = vmax.f32 %v858, 1e-24
          %v912 = vmax.f32 %v860, 1e-24
          %v913 = vmax.f32 %v862, 1e-24
          %v914 = vmax.f32 %v864, 1e-24
          %v915 = vmax.f32 %v866, 1e-24
          %v916 = vmax.f32 %v868, 1e-24
          %v917 = vmax.f32 %v870, 1e-24
          %v918 = vmax.f32 %v872, 1e-24
          %v919 = vmax.f32 %v874, 1e-24
          %v920 = vmax.f32 %v876, 1e-24
          %v921 = vmax.f32 %v878, 1e-24
          %v922 = vmax.f32 %v880, 1e-24
          %v923 = vmax.f32 %v882, 1e-24
          %v924 = vmax.f32 %v884, 1e-24
          %v925 = vmax.f32 %v886, 1e-24
          %v926 = vmax.f32 %v888, 1e-24
          %v927 = vmax.f32 %v890, 1e-24
          %v928 = vmax.f32 %v892, 1e-24
          %v929 = vmax.f32 %v894, 1e-24
          %v930 = vmax.f32 %v896, 1e-24
          %v931 = vmax.f32 %v898, 1e-24
          %v932 = vmax.f32 %v900, 1e-24
          %v933 = vrsqrt.pop %v901
          %v934 = vrsqrt.pop %v902
          %v935 = vrsqrt.pop %v903
          %v936 = vrsqrt.pop %v904
          %v937 = vrsqrt.pop %v905
          %v938 = vrsqrt.pop %v906
          %v939 = vrsqrt.pop %v907
          %v940 = vrsqrt.pop %v908
          %v941 = vrsqrt.pop %v909
          %v942 = vrsqrt.pop %v910
          %v943 = vrsqrt.pop %v911
          %v944 = vrsqrt.pop %v912
          %v945 = vrsqrt.pop %v913
          %v946 = vrsqrt.pop %v914
          %v947 = vrsqrt.pop %v915
          %v948 = vrsqrt.pop %v916
          %v949 = vrsqrt.pop %v917
          %v950 = vrsqrt.pop %v918
          %v951 = vrsqrt.pop %v919
          %v952 = vrsqrt.pop %v920
          %v953 = vrsqrt.pop %v921
          %v954 = vrsqrt.pop %v922
          %v955 = vrsqrt.pop %v923
          %v956 = vrsqrt.pop %v924
          %v957 = vrsqrt.pop %v925
          %v958 = vrsqrt.pop %v926
          %v959 = vrsqrt.pop %v927
          %v960 = vrsqrt.pop %v928
          %v961 = vrsqrt.pop %v929
          %v962 = vrsqrt.pop %v930
          %v963 = vrsqrt.pop %v931
          %v964 = vrsqrt.pop %v932
          %v965 = vmul.f32 %v769, %v933
          %v966 = vmul.f32 %v770, %v934
          %v967 = vmul.f32 %v771, %v935
          %v968 = vmul.f32 %v772, %v936
          %v969 = vmul.f32 %v773, %v937
          %v970 = vmul.f32 %v774, %v938
          %v971 = vmul.f32 %v775, %v939
          %v972 = vmul.f32 %v776, %v940
          %v973 = vmul.f32 %v777, %v941
          %v974 = vmul.f32 %v778, %v942
          %v975 = vmul.f32 %v779, %v943
          %v976 = vmul.f32 %v780, %v944
          %v977 = vmul.f32 %v781, %v945
          %v978 = vmul.f32 %v782, %v946
          %v979 = vmul.f32 %v783, %v947
          %v980 = vmul.f32 %v784, %v948
          %v981 = vmul.f32 %v785, %v949
          %v982 = vmul.f32 %v786, %v950
          %v983 = vmul.f32 %v787, %v951
          %v984 = vmul.f32 %v788, %v952
          %v985 = vmul.f32 %v789, %v953
          %v986 = vmul.f32 %v790, %v954
          %v987 = vmul.f32 %v791, %v955
          %v988 = vmul.f32 %v792, %v956
          %v989 = vmul.f32 %v793, %v957
          %v990 = vmul.f32 %v794, %v958
          %v991 = vmul.f32 %v795, %v959
          %v992 = vmul.f32 %v796, %v960
          %v993 = vmul.f32 %v797, %v961
          %v994 = vmul.f32 %v798, %v962
          %v995 = vmul.f32 %v799, %v963
          %v996 = vmul.f32 %v800, %v964
          %s997 = scalar_lea.vmem [#allocation8], %s547
          %998 = vst [vmem:[%s997] sm:$0xff] %v965
          %999 = vst [vmem:[%s997 + $0x8] sm:$0xff] %v966
          %1000 = vst [vmem:[%s997 + $0x10] sm:$0xff] %v967
          %1001 = vst [vmem:[%s997 + $0x18] sm:$0xff] %v968
          %1002 = vst [vmem:[%s997 + $0x20] sm:$0xff] %v969
          %1003 = vst [vmem:[%s997 + $0x28] sm:$0xff] %v970
          %1004 = vst [vmem:[%s997 + $0x30] sm:$0xff] %v971
          %1005 = vst [vmem:[%s997 + $0x38] sm:$0xff] %v972
          %1006 = vst [vmem:[%s997 + $0x40] sm:$0xff] %v973
          %1007 = vst [vmem:[%s997 + $0x48] sm:$0xff] %v974
          %1008 = vst [vmem:[%s997 + $0x50] sm:$0xff] %v975
          %1009 = vst [vmem:[%s997 + $0x58] sm:$0xff] %v976
          %1010 = vst [vmem:[%s997 + $0x60] sm:$0xff] %v977
          %1011 = vst [vmem:[%s997 + $0x68] sm:$0xff] %v978
          %1012 = vst [vmem:[%s997 + $0x70] sm:$0xff] %v979
          %1013 = vst [vmem:[%s997 + $0x78] sm:$0xff] %v980
          %1014 = vst [vmem:[%s997 + $0x80] sm:$0xff] %v981
          %1015 = vst [vmem:[%s997 + $0x88] sm:$0xff] %v982
          %1016 = vst [vmem:[%s997 + $0x90] sm:$0xff] %v983
          %1017 = vst [vmem:[%s997 + $0x98] sm:$0xff] %v984
          %1018 = vst [vmem:[%s997 + $0xa0] sm:$0xff] %v985
          %1019 = vst [vmem:[%s997 + $0xa8] sm:$0xff] %v986
          %1020 = vst [vmem:[%s997 + $0xb0] sm:$0xff] %v987
          %1021 = vst [vmem:[%s997 + $0xb8] sm:$0xff] %v988
          %1022 = vst [vmem:[%s997 + $0xc0] sm:$0xff] %v989
          %1023 = vst [vmem:[%s997 + $0xc8] sm:$0xff] %v990
          %1024 = vst [vmem:[%s997 + $0xd0] sm:$0xff] %v991
          %1025 = vst [vmem:[%s997 + $0xd8] sm:$0xff] %v992
          %1026 = vst [vmem:[%s997 + $0xe0] sm:$0xff] %v993
          %1027 = vst [vmem:[%s997 + $0xe8] sm:$0xff] %v994
          %1028 = vst [vmem:[%s997 + $0xf0] sm:$0xff] %v995
          %1029 = vst [vmem:[%s997 + $0xf8] sm:$0xff] %v996
        $region48: #{tpu_custom_call.1} parent=27 // pred_fallthru
          _
        %p1030 = scmp.lt.s32.totalorder %s23, 1
        // Predicated region
        $region49: #{tpu_custom_call.1} parent=27 // pred_check
          %p1031 = pneg %p1030
        $region50: #{tpu_custom_call.1} parent=27 // pred_check_branch
          %1033 = sbr.rel (%p1031) target = $region52
        $region51: #{tpu_custom_call.1} parent=27 // pred_region
          %s1034 = scalar_lea.vmem [#allocation8], %s547
          %1035 = vst [vmem:[%s1034] sm:$0xff] %v769
          %1036 = vst [vmem:[%s1034 + $0x8] sm:$0xff] %v770
          %1037 = vst [vmem:[%s1034 + $0x10] sm:$0xff] %v771
          %1038 = vst [vmem:[%s1034 + $0x18] sm:$0xff] %v772
          %1039 = vst [vmem:[%s1034 + $0x20] sm:$0xff] %v773
          %1040 = vst [vmem:[%s1034 + $0x28] sm:$0xff] %v774
          %1041 = vst [vmem:[%s1034 + $0x30] sm:$0xff] %v775
          %1042 = vst [vmem:[%s1034 + $0x38] sm:$0xff] %v776
          %1043 = vst [vmem:[%s1034 + $0x40] sm:$0xff] %v777
          %1044 = vst [vmem:[%s1034 + $0x48] sm:$0xff] %v778
          %1045 = vst [vmem:[%s1034 + $0x50] sm:$0xff] %v779
          %1046 = vst [vmem:[%s1034 + $0x58] sm:$0xff] %v780
          %1047 = vst [vmem:[%s1034 + $0x60] sm:$0xff] %v781
          %1048 = vst [vmem:[%s1034 + $0x68] sm:$0xff] %v782
          %1049 = vst [vmem:[%s1034 + $0x70] sm:$0xff] %v783
          %1050 = vst [vmem:[%s1034 + $0x78] sm:$0xff] %v784
          %1051 = vst [vmem:[%s1034 + $0x80] sm:$0xff] %v785
          %1052 = vst [vmem:[%s1034 + $0x88] sm:$0xff] %v786
          %1053 = vst [vmem:[%s1034 + $0x90] sm:$0xff] %v787
          %1054 = vst [vmem:[%s1034 + $0x98] sm:$0xff] %v788
          %1055 = vst [vmem:[%s1034 + $0xa0] sm:$0xff] %v789
          %1056 = vst [vmem:[%s1034 + $0xa8] sm:$0xff] %v790
          %1057 = vst [vmem:[%s1034 + $0xb0] sm:$0xff] %v791
          %1058 = vst [vmem:[%s1034 + $0xb8] sm:$0xff] %v792
          %1059 = vst [vmem:[%s1034 + $0xc0] sm:$0xff] %v793
          %1060 = vst [vmem:[%s1034 + $0xc8] sm:$0xff] %v794
          %1061 = vst [vmem:[%s1034 + $0xd0] sm:$0xff] %v795
          %1062 = vst [vmem:[%s1034 + $0xd8] sm:$0xff] %v796
          %1063 = vst [vmem:[%s1034 + $0xe0] sm:$0xff] %v797
          %1064 = vst [vmem:[%s1034 + $0xe8] sm:$0xff] %v798
          %1065 = vst [vmem:[%s1034 + $0xf0] sm:$0xff] %v799
          %1066 = vst [vmem:[%s1034 + $0xf8] sm:$0xff] %v800
        $region52: #{tpu_custom_call.1} parent=27 // pred_fallthru
          _
        // Predicated region
        $region53: #{tpu_custom_call.1} parent=27 // pred_check
          %p1067 = pneg %p96
        $region54: #{tpu_custom_call.1} parent=27 // pred_check_branch
          %1069 = sbr.rel (%p1067) target = $region56
        $region55: #{tpu_custom_call.1} parent=27 // pred_region
          %s1071 = ssub.s32 4096, 4096
          %1072 = vsyncadd [#allocation7], %s1071
          %s1073 = sshll.u32 [#allocation8], 4
          %s1074 = int_to_ptr.vmem [resolvable:$true] %s1073
          %1079 = dma.vmem_to_hbm [thread:$0]  %s1074, 4096, %s4, [#allocation7], 128, 128, 8
        $region56: #{tpu_custom_call.1} parent=27 // pred_fallthru
          _
        // Predicated region
        $region57: #{tpu_custom_call.1} parent=27 // pred_check
          %p1080 = pneg %p96
        $region58: #{tpu_custom_call.1} parent=27 // pred_check_branch
          %1082 = sbr.rel (%p1080) target = $region60
        $region59: #{tpu_custom_call.1} parent=27 // pred_region
          %1083 = dma.done [#allocation7], 4096
        $region60: #{tpu_custom_call.1} parent=27 // pred_fallthru
          _
      $region28: #{tpu_custom_call.1} parent=5 // pred_fallthru
        _
      %p1084 = scmp.le.s32.totalorder 2, %s14
      // Predicated region
      $region61: #{tpu_custom_call.1} parent=5 // pred_check
        %p1085 = pneg %p1084
      $region62: #{tpu_custom_call.1} parent=5 // pred_check_branch
        %1087 = sbr.rel (%p1085) target = $region64
      $region63: #{tpu_custom_call.1} parent=5 // pred_region
        %s1088 = ssub.s32 %s14, 2
      $region64: #{tpu_custom_call.1} parent=5 // pred_fallthru
        _
    $region6: #{tpu_custom_call.1} parent=1 // loop_footer
      %s18 = sadd.s32 1, %s14
    $region7: #{tpu_custom_call.1} parent=1 // loop_footer_branch
      %13 = sbr.rel target = $region3
    $region8: #{tpu_custom_call.1} parent=1 // loop_exit
      _
    %1089 = vsyncpa [#allocation6], 1
    %s1090 = scalar_lea.sflag [#allocation6], 1
    %1091 = vsyncpa %s1090, 1
    %1092 = vsyncpa [#allocation7], 1
    %s1093 = scalar_lea.sflag [#allocation7], 1
    %1094 = vsyncpa %s1093, 1
  %1095 = vsyncmov [#allocation4]
  %s1096 = vpop.sfrf %1095
  %p1097 = scmp.eq.s32.totalorder %s1096, 0
  %p1098 = pneg %p1097
  %1100 = shalt.err (%p1098)
  %s1101 = scalar_lea.sflag [#allocation4], 1
  %1102 = vsyncmov %s1101
  %s1103 = vpop.sfrf %1102
  %p1104 = scmp.eq.s32.totalorder %s1103, 0
  %p1105 = pneg %p1104
  %1107 = shalt.err (%p1105)

</llo_original>
